<compile_context>
chip_gen: v7x
topology: tpu7x:2x2x1
jax: 0.10.0
libtpu: 0.0.40
codegen_flags: <defaults>
</compile_context>

<pallas_src>
import jax
import jax.numpy as jnp
from jax import lax
from jax.experimental import pallas as pl
from jax.experimental.pallas import tpu as pltpu

KERNEL_SIZE = 3
DILATIONS = (1, 3, 5)
LEAKY_SLOPE = 0.1
# Total receptive radius of the chain conv1(dilation=d) -> conv2(dilation=1).
HALO = sum(d * (KERNEL_SIZE - 1) // 2 + (KERNEL_SIZE - 1) // 2 for d in DILATIONS)  # = 12


def _leaky_relu(x, slope=LEAKY_SLOPE):
    return jnp.where(x > 0, x, slope * x)


def _shifted_taps(a, d):
    """in[:, j-d] and in[:, j+d] as in-register lane shifts (zeros at window edges)."""
    tw = a.shape[-1]
    tap_m = jnp.pad(a[:, : tw - d], ((0, 0), (d, 0)))  # a[j - d]
    tap_p = jnp.pad(a[:, d:], ((0, 0), (0, d)))        # a[j + d]
    return tap_m, tap_p


def _make_kernel(seq_len, t_tile, compute_dtype):
    tw = t_tile + 2 * HALO  # haloed window width

    def kernel(xl_ref, xc_ref, xr_ref, w1_ref, w2_ref, o_ref):
        t = pl.program_id(1)

        # Haloed window (C, Tw): last HALO lanes of the left 128-strip, the
        # centre tile, first HALO lanes of the right 128-strip.
        win = jnp.concatenate(
            [xl_ref[:, 128 - HALO:], xc_ref[...], xr_ref[:, :HALO]], axis=-1
        ).astype(jnp.float32)

        # Original column index of every window lane.  Columns outside [0, T)
        # (true sequence ends, ragged tail of the last tile, clamped halo
        # strips) must be treated as zeros by every conv — this reproduces
        # Conv1d "same" zero padding exactly without any padded HBM copy.
        pos = t * t_tile - HALO + lax.broadcasted_iota(jnp.int32, (1, tw), 1)
        valid = jnp.logical_and(pos >= 0, pos < seq_len)

        ones_row = jnp.ones((1, tw), compute_dtype)  # folds the bias into the matmul

        h = win
        for layer, dilation in enumerate(DILATIONS):
            residual = h
            for w_ref, d in ((w1_ref, dilation), (w2_ref, 1)):
                # Conv input: leaky-ReLU, re-zeroed outside the real sequence.
                a = jnp.where(valid, _leaky_relu(h), 0.0).astype(compute_dtype)
                tap_m, tap_p = _shifted_taps(a, d)
                # im2col RHS: taps stacked on sublanes + ones row (bias).
                rhs = jnp.concatenate([tap_m, a, tap_p, ones_row], axis=0)
                # One MXU matmul per conv, f32 accumulation.
                h = jnp.dot(w_ref[layer], rhs, preferred_element_type=jnp.float32)
            h = h + residual

        # Only the interior columns of the window belong to this tile's output
        # (lane-dense store; ragged last block is masked by Pallas itself).
        o_ref[...] = h[:, HALO:HALO + t_tile].astype(o_ref.dtype)

    return kernel


def _pack_weights(w, b, compute_dtype):
    """(L, C_out, C_in, K), (L, C_out) -> (L, C_out, K*C_in + 1) lane-dense im2col LHS."""
    L, co, ci, K = w.shape
    w_im2col = jnp.transpose(w, (0, 1, 3, 2)).reshape(L, co, K * ci)  # [.., k*C_in + i]
    return jnp.concatenate([w_im2col, b[..., None]], axis=-1).astype(compute_dtype)


def _default_t_tile(C, x_itemsize):
    # ~28 MiB working-set budget so double-buffered blocks + live intermediates
    # + compiler scratch also fit v7x's 64 MiB physical VMEM.
    budget = 28 * 1024 * 1024
    per_col = (2 * 2 * C * x_itemsize   # centre input + output, double-buffered
               + 3 * C * 4              # f32 live intermediates (win / h / residual)
               + 4 * C * 2)             # bf16 activation + taps / im2col RHS
    return max(128, (budget // per_col) // 128 * 128)


def hifigan_residual_block(x, w1, b1, w2, b2, *, t_tile=None,
                           compute_dtype=jnp.bfloat16):
    """x: (B, C, T); w1/w2: (nlayers, C, C, K); b1/b2: (nlayers, C)."""
    B, C, T = x.shape
    L = w1.shape[0]
    KC1 = KERNEL_SIZE * C + 1

    if t_tile is None:
        t_tile = _default_t_tile(C, x.dtype.itemsize)
    # Avoid blocks larger than the array when T >= 128 (keeps ragged handling simple).
    t_tile = min(t_tile, max(128, (T // 128) * 128))
    assert t_tile % 128 == 0 and t_tile >= 128
    n_tiles = pl.cdiv(T, t_tile)
    r = t_tile // 128          # centre-tile width measured in 128-lane blocks
    n128 = pl.cdiv(T, 128)     # number of 128-lane blocks covering T
    tw = t_tile + 2 * HALO

    w1p = _pack_weights(w1, b1, compute_dtype)
    w2p = _pack_weights(w2, b2, compute_dtype)

    x_bytes = x.dtype.itemsize
    w_bytes = jnp.dtype(compute_dtype).itemsize

    vmem_estimate = (
        2 * (2 * C * t_tile + 2 * C * 128) * x_bytes   # centre in + out + halo strips (x2 buffers)
        + 2 * 2 * L * C * KC1 * w_bytes                # packed weights (worst-case x2 buffers)
        + 3 * C * tw * 4                               # f32 win / h / residual
        + (4 * C + 1) * tw * w_bytes                   # activation, taps, im2col RHS
    )
    vmem_limit = int(min(64 * 1024 * 1024,
                         max(32 * 1024 * 1024, vmem_estimate * 5 // 4)))

    flops = 2 * C * KC1 * tw * (2 * L) * B * n_tiles
    bytes_accessed = (2 * B * C * T * x_bytes                 # activations read + write
                      + B * n_tiles * 2 * C * 128 * x_bytes   # halo strips
                      + (w1p.size + w2p.size) * w_bytes)

    def halo_spec(index_map):
        return pl.BlockSpec((pl.Squeezed(), C, 128), index_map)

    def tile_spec(index_map):
        return pl.BlockSpec((pl.Squeezed(), C, t_tile), index_map)

    def full_spec(shape):
        n = len(shape)
        return pl.BlockSpec(shape, lambda b, t, _n=n: (0,) * _n)

    out = pl.pallas_call(
        _make_kernel(T, t_tile, compute_dtype),
        out_shape=jax.ShapeDtypeStruct((B, C, T), x.dtype),
        grid_spec=pltpu.PrefetchScalarGridSpec(
            num_scalar_prefetch=0,
            grid=(B, n_tiles),
            in_specs=[
                # 128-lane strip just before the tile (clamped at the left edge;
                # clamped/garbage columns are neutralised by the validity mask).
                halo_spec(lambda b, t: (b, 0, jnp.maximum(t * r - 1, 0))),
                # centre tile
                tile_spec(lambda b, t: (b, 0, t)),
                # 128-lane strip just after the tile (clamped at the right edge).
                halo_spec(lambda b, t: (b, 0, jnp.minimum((t + 1) * r, n128 - 1))),
                full_spec(w1p.shape),    # packed weights, resident across the grid
                full_spec(w2p.shape),
            ],
            out_specs=tile_spec(lambda b, t: (b, 0, t)),
        ),
        compiler_params=pltpu.CompilerParams(
            dimension_semantics=("parallel", "parallel"),
            vmem_limit_bytes=vmem_limit,
        ),
        cost_estimate=pl.CostEstimate(
            flops=int(flops), transcendentals=0, bytes_accessed=int(bytes_accessed)),
    )(x, x, x, w1p, w2p)

    return out


def reference(x, w1, b1, w2, b2):
    # Pure-JAX f32 reference reproducing the PyTorch forward exactly.
    h = x
    for layer, d in enumerate(DILATIONS):
        residual = h
        a = jnp.where(h > 0, h, LEAKY_SLOPE * h)
        pad = d * (KERNEL_SIZE - 1) // 2
        h = lax.conv_general_dilated(
            a, w1[layer], window_strides=(1,), padding=[(pad, pad)],
            rhs_dilation=(d,), dimension_numbers=("NCH", "OIH", "NCH"),
        ) + b1[layer][None, :, None]
        a = jnp.where(h > 0, h, LEAKY_SLOPE * h)
        h = lax.conv_general_dilated(
            a, w2[layer], window_strides=(1,), padding=[(1, 1)],
            rhs_dilation=(1,), dimension_numbers=("NCH", "OIH", "NCH"),
        ) + b2[layer][None, :, None]
        h = h + residual
    return h


if __name__ == "__main__":
    # Small shapes; T deliberately NOT a multiple of the tile so the multi-tile,
    # halo, boundary-mask, clamped-strip and ragged-last-block paths all run.
    B, C, T = 2, 8, 320
    L = len(DILATIONS)

    key = jax.random.PRNGKey(0)
    kx, kw1, kb1, kw2, kb2 = jax.random.split(key, 5)
    bound = 1.0 / (C * KERNEL_SIZE) ** 0.5  # PyTorch Conv1d default init range

    x = jax.random.normal(kx, (B, C, T), jnp.float32)
    w1 = jax.random.uniform(kw1, (L, C, C, KERNEL_SIZE), jnp.float32, -bound, bound)
    b1 = jax.random.uniform(kb1, (L, C), jnp.float32, -bound, bound)
    w2 = jax.random.uniform(kw2, (L, C, C, KERNEL_SIZE), jnp.float32, -bound, bound)
    b2 = jax.random.uniform(kb2, (L, C), jnp.float32, -bound, bound)

    # TODO(synk): apply_weight_norm / remove_weight_norm are training-time
    # reparameterizations with no effect on this forward pass; not implemented.

    ref = reference(x, w1, b1, w2, b2)

    # 1) Exact-semantics check with f32 matmuls, multi-tile (validates halo strips,
    #    boundary masking, ragged last block and weight packing).
    out_f32 = hifigan_residual_block(x, w1, b1, w2, b2, t_tile=128,
                                     compute_dtype=jnp.float32)
    jax.block_until_ready(out_f32)
    assert out_f32.shape == (B, C, T) and out_f32.dtype == x.dtype
    err32 = float(jnp.max(jnp.abs(out_f32 - ref)))
    assert jnp.allclose(out_f32, ref, atol=1e-4, rtol=1e-4), err32

    # 2) Default fast path: bf16 MXU operands with f32 accumulation.
    out_bf16 = hifigan_residual_block(x, w1, b1, w2, b2, t_tile=128,
                                      compute_dtype=jnp.bfloat16)
    jax.block_until_ready(out_bf16)
    assert out_bf16.shape == (B, C, T) and out_bf16.dtype == x.dtype
    err16 = float(jnp.max(jnp.abs(out_bf16 - ref)))
    assert jnp.allclose(out_bf16, ref, atol=5e-2, rtol=5e-2), err16

    # 3) Auto tile-size path (t_tile derived from the VMEM budget, clamped for
    #    small T), f32 exactness again.
    out_auto = hifigan_residual_block(x, w1, b1, w2, b2, t_tile=None,
                                      compute_dtype=jnp.float32)
    jax.block_until_ready(out_auto)
    assert out_auto.shape == (B, C, T) and out_auto.dtype == x.dtype
    err_auto = float(jnp.max(jnp.abs(out_auto - ref)))
    assert jnp.allclose(out_auto, ref, atol=1e-4, rtol=1e-4), err_auto

    print("KERNEL_OK")
</pallas_src>

<mosaic_0001>
module attributes {stable_mosaic.version = 11 : i64} {
  func.func @kernel(%arg0: i32, %arg1: i32, %arg2: memref<1x8x128xf32, #tpu.memory_space<vmem>>, %arg3: memref<1x8x128xf32, #tpu.memory_space<vmem>>, %arg4: memref<1x8x128xf32, #tpu.memory_space<vmem>>, %arg5: memref<3x8x25xf32, #tpu.memory_space<vmem>>, %arg6: memref<3x8x25xf32, #tpu.memory_space<vmem>>, %arg7: memref<1x8x128xf32, #tpu.memory_space<vmem>>) attributes {dimension_semantics = [#tpu.dimension_semantics<parallel>, #tpu.dimension_semantics<parallel>], iteration_bounds = array<i64: 2, 3>, scalar_prefetch = 0 : i64, scratch_operands = 0 : i64, tpu.core_type = #tpu.core_type<tc>, window_params = [{transform_indices = @transform_0, window_bounds = array<i64: 1, 8, 128>}, {transform_indices = @transform_1, window_bounds = array<i64: 1, 8, 128>}, {transform_indices = @transform_2, window_bounds = array<i64: 1, 8, 128>}, {pipeline_mode = #tpu.pipeline_mode<synchronous>, transform_indices = @transform_3, window_bounds = array<i64: 3, 8, 25>}, {pipeline_mode = #tpu.pipeline_mode<synchronous>, transform_indices = @transform_4, window_bounds = array<i64: 3, 8, 25>}, {transform_indices = @transform_5, window_bounds = array<i64: 1, 8, 128>}]} {
    %c0 = arith.constant 0 : index
    %c0_0 = arith.constant 0 : index
    %c116 = arith.constant 116 : index
    %0 = vector.load %arg2[%c0, %c0_0, %c116] : memref<1x8x128xf32, #tpu.memory_space<vmem>>, vector<1x8x12xf32>
    %1 = vector.shape_cast %0 : vector<1x8x12xf32> to vector<8x12xf32>
    %c0_1 = arith.constant 0 : index
    %c0_2 = arith.constant 0 : index
    %c0_3 = arith.constant 0 : index
    %2 = vector.load %arg3[%c0_1, %c0_2, %c0_3] : memref<1x8x128xf32, #tpu.memory_space<vmem>>, vector<1x8x128xf32>
    %3 = vector.shape_cast %2 : vector<1x8x128xf32> to vector<8x128xf32>
    %c0_4 = arith.constant 0 : index
    %c0_5 = arith.constant 0 : index
    %c0_6 = arith.constant 0 : index
    %4 = vector.load %arg4[%c0_4, %c0_5, %c0_6] : memref<1x8x128xf32, #tpu.memory_space<vmem>>, vector<1x8x12xf32>
    %5 = vector.shape_cast %4 : vector<1x8x12xf32> to vector<8x12xf32>
    %6 = tpu.concatenate %1, %3, %5 in 1 : vector<8x12xf32>, vector<8x128xf32>, vector<8x12xf32> -> vector<8x152xf32>
    %c128_i32 = arith.constant 128 : i32
    %7 = arith.muli %arg1, %c128_i32 : i32
    %c12_i32 = arith.constant 12 : i32
    %8 = arith.subi %7, %c12_i32 : i32
    %9 = tpu.iota {dimensions = array<i32: 1>} : vector<1x152xi32>
    %10 = vector.broadcast %8 : i32 to vector<1x152xi32>
    %11 = arith.addi %10, %9 : vector<1x152xi32>
    %c0_i32 = arith.constant 0 : i32
    %12 = vector.broadcast %c0_i32 : i32 to vector<1x152xi32>
    %13 = arith.cmpi sge, %11, %12 : vector<1x152xi32>
    %c320_i32 = arith.constant 320 : i32
    %14 = vector.broadcast %c320_i32 : i32 to vector<1x152xi32>
    %15 = arith.cmpi slt, %11, %14 : vector<1x152xi32>
    %16 = arith.andi %13, %15 : vector<1x152xi1>
    %cst = arith.constant 1.000000e+00 : f32
    %17 = vector.broadcast %cst : f32 to vector<1x152xf32>
    %cst_7 = arith.constant 0.000000e+00 : f32
    %18 = vector.broadcast %cst_7 : f32 to vector<8x152xf32>
    %19 = arith.cmpf ogt, %6, %18 : vector<8x152xf32>
    %cst_8 = arith.constant 1.000000e-01 : f32
    %20 = vector.broadcast %cst_8 : f32 to vector<8x152xf32>
    %21 = arith.mulf %20, %6 : vector<8x152xf32>
    %22 = arith.select %19, %6, %21 : vector<8x152xi1>, vector<8x152xf32>
    %cst_9 = arith.constant 0.000000e+00 : f32
    %23 = vector.shape_cast %16 : vector<1x152xi1> to vector<1x152xi1>
    %24 = vector.broadcast %23 : vector<1x152xi1> to vector<8x152xi1>
    %25 = vector.broadcast %cst_9 : f32 to vector<8x152xf32>
    %26 = arith.select %24, %22, %25 : vector<8x152xi1>, vector<8x152xf32>
    %27 = vector.extract_strided_slice %26 {offsets = [0, 0], sizes = [8, 151], strides = [1, 1]} : vector<8x152xf32> to vector<8x151xf32>
    %c0_i32_10 = arith.constant 0 : i32
    %28 = arith.sitofp %c0_i32_10 : i32 to f32
    %29 = vector.broadcast %28 : f32 to vector<8x1xf32>
    %30 = tpu.concatenate %29, %27 in 1 : vector<8x1xf32>, vector<8x151xf32> -> vector<8x152xf32>
    %31 = vector.extract_strided_slice %26 {offsets = [0, 1], sizes = [8, 151], strides = [1, 1]} : vector<8x152xf32> to vector<8x151xf32>
    %c0_i32_11 = arith.constant 0 : i32
    %32 = arith.sitofp %c0_i32_11 : i32 to f32
    %33 = vector.broadcast %32 : f32 to vector<8x1xf32>
    %34 = tpu.concatenate %31, %33 in 1 : vector<8x151xf32>, vector<8x1xf32> -> vector<8x152xf32>
    %35 = tpu.concatenate %30, %26, %34, %17 in 0 : vector<8x152xf32>, vector<8x152xf32>, vector<8x152xf32>, vector<1x152xf32> -> vector<25x152xf32>
    %c0_12 = arith.constant 0 : index
    %c0_13 = arith.constant 0 : index
    %c0_14 = arith.constant 0 : index
    %36 = vector.load %arg5[%c0_12, %c0_13, %c0_14] : memref<3x8x25xf32, #tpu.memory_space<vmem>>, vector<1x8x25xf32>
    %37 = vector.shape_cast %36 : vector<1x8x25xf32> to vector<8x25xf32>
    %cst_15 = arith.constant dense<0.000000e+00> : vector<8x152xf32>
    %38 = tpu.matmul %37, %35, %cst_15 {dimension_numbers = #tpu.dot_dimension_numbers<[1], [0], [0], [1], [0, 0, 1, 1], [], []>} : vector<8x25xf32>, vector<25x152xf32>, vector<8x152xf32> -> vector<8x152xf32>
    %cst_16 = arith.constant 0.000000e+00 : f32
    %39 = vector.broadcast %cst_16 : f32 to vector<8x152xf32>
    %40 = arith.cmpf ogt, %38, %39 : vector<8x152xf32>
    %cst_17 = arith.constant 1.000000e-01 : f32
    %41 = vector.broadcast %cst_17 : f32 to vector<8x152xf32>
    %42 = arith.mulf %41, %38 : vector<8x152xf32>
    %43 = arith.select %40, %38, %42 : vector<8x152xi1>, vector<8x152xf32>
    %cst_18 = arith.constant 0.000000e+00 : f32
    %44 = vector.shape_cast %16 : vector<1x152xi1> to vector<1x152xi1>
    %45 = vector.broadcast %44 : vector<1x152xi1> to vector<8x152xi1>
    %46 = vector.broadcast %cst_18 : f32 to vector<8x152xf32>
    %47 = arith.select %45, %43, %46 : vector<8x152xi1>, vector<8x152xf32>
    %48 = vector.extract_strided_slice %47 {offsets = [0, 0], sizes = [8, 151], strides = [1, 1]} : vector<8x152xf32> to vector<8x151xf32>
    %c0_i32_19 = arith.constant 0 : i32
    %49 = arith.sitofp %c0_i32_19 : i32 to f32
    %50 = vector.broadcast %49 : f32 to vector<8x1xf32>
    %51 = tpu.concatenate %50, %48 in 1 : vector<8x1xf32>, vector<8x151xf32> -> vector<8x152xf32>
    %52 = vector.extract_strided_slice %47 {offsets = [0, 1], sizes = [8, 151], strides = [1, 1]} : vector<8x152xf32> to vector<8x151xf32>
    %c0_i32_20 = arith.constant 0 : i32
    %53 = arith.sitofp %c0_i32_20 : i32 to f32
    %54 = vector.broadcast %53 : f32 to vector<8x1xf32>
    %55 = tpu.concatenate %52, %54 in 1 : vector<8x151xf32>, vector<8x1xf32> -> vector<8x152xf32>
    %56 = tpu.concatenate %51, %47, %55, %17 in 0 : vector<8x152xf32>, vector<8x152xf32>, vector<8x152xf32>, vector<1x152xf32> -> vector<25x152xf32>
    %c0_21 = arith.constant 0 : index
    %c0_22 = arith.constant 0 : index
    %c0_23 = arith.constant 0 : index
    %57 = vector.load %arg6[%c0_21, %c0_22, %c0_23] : memref<3x8x25xf32, #tpu.memory_space<vmem>>, vector<1x8x25xf32>
    %58 = vector.shape_cast %57 : vector<1x8x25xf32> to vector<8x25xf32>
    %cst_24 = arith.constant dense<0.000000e+00> : vector<8x152xf32>
    %59 = tpu.matmul %58, %56, %cst_24 {dimension_numbers = #tpu.dot_dimension_numbers<[1], [0], [0], [1], [0, 0, 1, 1], [], []>} : vector<8x25xf32>, vector<25x152xf32>, vector<8x152xf32> -> vector<8x152xf32>
    %60 = arith.addf %59, %6 : vector<8x152xf32>
    %cst_25 = arith.constant 0.000000e+00 : f32
    %61 = vector.broadcast %cst_25 : f32 to vector<8x152xf32>
    %62 = arith.cmpf ogt, %60, %61 : vector<8x152xf32>
    %cst_26 = arith.constant 1.000000e-01 : f32
    %63 = vector.broadcast %cst_26 : f32 to vector<8x152xf32>
    %64 = arith.mulf %63, %60 : vector<8x152xf32>
    %65 = arith.select %62, %60, %64 : vector<8x152xi1>, vector<8x152xf32>
    %cst_27 = arith.constant 0.000000e+00 : f32
    %66 = vector.shape_cast %16 : vector<1x152xi1> to vector<1x152xi1>
    %67 = vector.broadcast %66 : vector<1x152xi1> to vector<8x152xi1>
    %68 = vector.broadcast %cst_27 : f32 to vector<8x152xf32>
    %69 = arith.select %67, %65, %68 : vector<8x152xi1>, vector<8x152xf32>
    %70 = vector.extract_strided_slice %69 {offsets = [0, 0], sizes = [8, 149], strides = [1, 1]} : vector<8x152xf32> to vector<8x149xf32>
    %c0_i32_28 = arith.constant 0 : i32
    %71 = arith.sitofp %c0_i32_28 : i32 to f32
    %72 = vector.broadcast %71 : f32 to vector<8x3xf32>
    %73 = tpu.concatenate %72, %70 in 1 : vector<8x3xf32>, vector<8x149xf32> -> vector<8x152xf32>
    %74 = vector.extract_strided_slice %69 {offsets = [0, 3], sizes = [8, 149], strides = [1, 1]} : vector<8x152xf32> to vector<8x149xf32>
    %c0_i32_29 = arith.constant 0 : i32
    %75 = arith.sitofp %c0_i32_29 : i32 to f32
    %76 = vector.broadcast %75 : f32 to vector<8x3xf32>
    %77 = tpu.concatenate %74, %76 in 1 : vector<8x149xf32>, vector<8x3xf32> -> vector<8x152xf32>
    %78 = tpu.concatenate %73, %69, %77, %17 in 0 : vector<8x152xf32>, vector<8x152xf32>, vector<8x152xf32>, vector<1x152xf32> -> vector<25x152xf32>
    %c1 = arith.constant 1 : index
    %c0_30 = arith.constant 0 : index
    %c0_31 = arith.constant 0 : index
    %79 = vector.load %arg5[%c1, %c0_30, %c0_31] : memref<3x8x25xf32, #tpu.memory_space<vmem>>, vector<1x8x25xf32>
    %80 = vector.shape_cast %79 : vector<1x8x25xf32> to vector<8x25xf32>
    %cst_32 = arith.constant dense<0.000000e+00> : vector<8x152xf32>
    %81 = tpu.matmul %80, %78, %cst_32 {dimension_numbers = #tpu.dot_dimension_numbers<[1], [0], [0], [1], [0, 0, 1, 1], [], []>} : vector<8x25xf32>, vector<25x152xf32>, vector<8x152xf32> -> vector<8x152xf32>
    %cst_33 = arith.constant 0.000000e+00 : f32
    %82 = vector.broadcast %cst_33 : f32 to vector<8x152xf32>
    %83 = arith.cmpf ogt, %81, %82 : vector<8x152xf32>
    %cst_34 = arith.constant 1.000000e-01 : f32
    %84 = vector.broadcast %cst_34 : f32 to vector<8x152xf32>
    %85 = arith.mulf %84, %81 : vector<8x152xf32>
    %86 = arith.select %83, %81, %85 : vector<8x152xi1>, vector<8x152xf32>
    %cst_35 = arith.constant 0.000000e+00 : f32
    %87 = vector.shape_cast %16 : vector<1x152xi1> to vector<1x152xi1>
    %88 = vector.broadcast %87 : vector<1x152xi1> to vector<8x152xi1>
    %89 = vector.broadcast %cst_35 : f32 to vector<8x152xf32>
    %90 = arith.select %88, %86, %89 : vector<8x152xi1>, vector<8x152xf32>
    %91 = vector.extract_strided_slice %90 {offsets = [0, 0], sizes = [8, 151], strides = [1, 1]} : vector<8x152xf32> to vector<8x151xf32>
    %c0_i32_36 = arith.constant 0 : i32
    %92 = arith.sitofp %c0_i32_36 : i32 to f32
    %93 = vector.broadcast %92 : f32 to vector<8x1xf32>
    %94 = tpu.concatenate %93, %91 in 1 : vector<8x1xf32>, vector<8x151xf32> -> vector<8x152xf32>
    %95 = vector.extract_strided_slice %90 {offsets = [0, 1], sizes = [8, 151], strides = [1, 1]} : vector<8x152xf32> to vector<8x151xf32>
    %c0_i32_37 = arith.constant 0 : i32
    %96 = arith.sitofp %c0_i32_37 : i32 to f32
    %97 = vector.broadcast %96 : f32 to vector<8x1xf32>
    %98 = tpu.concatenate %95, %97 in 1 : vector<8x151xf32>, vector<8x1xf32> -> vector<8x152xf32>
    %99 = tpu.concatenate %94, %90, %98, %17 in 0 : vector<8x152xf32>, vector<8x152xf32>, vector<8x152xf32>, vector<1x152xf32> -> vector<25x152xf32>
    %c1_38 = arith.constant 1 : index
    %c0_39 = arith.constant 0 : index
    %c0_40 = arith.constant 0 : index
    %100 = vector.load %arg6[%c1_38, %c0_39, %c0_40] : memref<3x8x25xf32, #tpu.memory_space<vmem>>, vector<1x8x25xf32>
    %101 = vector.shape_cast %100 : vector<1x8x25xf32> to vector<8x25xf32>
    %cst_41 = arith.constant dense<0.000000e+00> : vector<8x152xf32>
    %102 = tpu.matmul %101, %99, %cst_41 {dimension_numbers = #tpu.dot_dimension_numbers<[1], [0], [0], [1], [0, 0, 1, 1], [], []>} : vector<8x25xf32>, vector<25x152xf32>, vector<8x152xf32> -> vector<8x152xf32>
    %103 = arith.addf %102, %60 : vector<8x152xf32>
    %cst_42 = arith.constant 0.000000e+00 : f32
    %104 = vector.broadcast %cst_42 : f32 to vector<8x152xf32>
    %105 = arith.cmpf ogt, %103, %104 : vector<8x152xf32>
    %cst_43 = arith.constant 1.000000e-01 : f32
    %106 = vector.broadcast %cst_43 : f32 to vector<8x152xf32>
    %107 = arith.mulf %106, %103 : vector<8x152xf32>
    %108 = arith.select %105, %103, %107 : vector<8x152xi1>, vector<8x152xf32>
    %cst_44 = arith.constant 0.000000e+00 : f32
    %109 = vector.shape_cast %16 : vector<1x152xi1> to vector<1x152xi1>
    %110 = vector.broadcast %109 : vector<1x152xi1> to vector<8x152xi1>
    %111 = vector.broadcast %cst_44 : f32 to vector<8x152xf32>
    %112 = arith.select %110, %108, %111 : vector<8x152xi1>, vector<8x152xf32>
    %113 = vector.extract_strided_slice %112 {offsets = [0, 0], sizes = [8, 147], strides = [1, 1]} : vector<8x152xf32> to vector<8x147xf32>
    %c0_i32_45 = arith.constant 0 : i32
    %114 = arith.sitofp %c0_i32_45 : i32 to f32
    %115 = vector.broadcast %114 : f32 to vector<8x5xf32>
    %116 = tpu.concatenate %115, %113 in 1 : vector<8x5xf32>, vector<8x147xf32> -> vector<8x152xf32>
    %117 = vector.extract_strided_slice %112 {offsets = [0, 5], sizes = [8, 147], strides = [1, 1]} : vector<8x152xf32> to vector<8x147xf32>
    %c0_i32_46 = arith.constant 0 : i32
    %118 = arith.sitofp %c0_i32_46 : i32 to f32
    %119 = vector.broadcast %118 : f32 to vector<8x5xf32>
    %120 = tpu.concatenate %117, %119 in 1 : vector<8x147xf32>, vector<8x5xf32> -> vector<8x152xf32>
    %121 = tpu.concatenate %116, %112, %120, %17 in 0 : vector<8x152xf32>, vector<8x152xf32>, vector<8x152xf32>, vector<1x152xf32> -> vector<25x152xf32>
    %c2 = arith.constant 2 : index
    %c0_47 = arith.constant 0 : index
    %c0_48 = arith.constant 0 : index
    %122 = vector.load %arg5[%c2, %c0_47, %c0_48] : memref<3x8x25xf32, #tpu.memory_space<vmem>>, vector<1x8x25xf32>
    %123 = vector.shape_cast %122 : vector<1x8x25xf32> to vector<8x25xf32>
    %cst_49 = arith.constant dense<0.000000e+00> : vector<8x152xf32>
    %124 = tpu.matmul %123, %121, %cst_49 {dimension_numbers = #tpu.dot_dimension_numbers<[1], [0], [0], [1], [0, 0, 1, 1], [], []>} : vector<8x25xf32>, vector<25x152xf32>, vector<8x152xf32> -> vector<8x152xf32>
    %cst_50 = arith.constant 0.000000e+00 : f32
    %125 = vector.broadcast %cst_50 : f32 to vector<8x152xf32>
    %126 = arith.cmpf ogt, %124, %125 : vector<8x152xf32>
    %cst_51 = arith.constant 1.000000e-01 : f32
    %127 = vector.broadcast %cst_51 : f32 to vector<8x152xf32>
    %128 = arith.mulf %127, %124 : vector<8x152xf32>
    %129 = arith.select %126, %124, %128 : vector<8x152xi1>, vector<8x152xf32>
    %cst_52 = arith.constant 0.000000e+00 : f32
    %130 = vector.shape_cast %16 : vector<1x152xi1> to vector<1x152xi1>
    %131 = vector.broadcast %130 : vector<1x152xi1> to vector<8x152xi1>
    %132 = vector.broadcast %cst_52 : f32 to vector<8x152xf32>
    %133 = arith.select %131, %129, %132 : vector<8x152xi1>, vector<8x152xf32>
    %134 = vector.extract_strided_slice %133 {offsets = [0, 0], sizes = [8, 151], strides = [1, 1]} : vector<8x152xf32> to vector<8x151xf32>
    %c0_i32_53 = arith.constant 0 : i32
    %135 = arith.sitofp %c0_i32_53 : i32 to f32
    %136 = vector.broadcast %135 : f32 to vector<8x1xf32>
    %137 = tpu.concatenate %136, %134 in 1 : vector<8x1xf32>, vector<8x151xf32> -> vector<8x152xf32>
    %138 = vector.extract_strided_slice %133 {offsets = [0, 1], sizes = [8, 151], strides = [1, 1]} : vector<8x152xf32> to vector<8x151xf32>
    %c0_i32_54 = arith.constant 0 : i32
    %139 = arith.sitofp %c0_i32_54 : i32 to f32
    %140 = vector.broadcast %139 : f32 to vector<8x1xf32>
    %141 = tpu.concatenate %138, %140 in 1 : vector<8x151xf32>, vector<8x1xf32> -> vector<8x152xf32>
    %142 = tpu.concatenate %137, %133, %141, %17 in 0 : vector<8x152xf32>, vector<8x152xf32>, vector<8x152xf32>, vector<1x152xf32> -> vector<25x152xf32>
    %c2_55 = arith.constant 2 : index
    %c0_56 = arith.constant 0 : index
    %c0_57 = arith.constant 0 : index
    %143 = vector.load %arg6[%c2_55, %c0_56, %c0_57] : memref<3x8x25xf32, #tpu.memory_space<vmem>>, vector<1x8x25xf32>
    %144 = vector.shape_cast %143 : vector<1x8x25xf32> to vector<8x25xf32>
    %cst_58 = arith.constant dense<0.000000e+00> : vector<8x152xf32>
    %145 = tpu.matmul %144, %142, %cst_58 {dimension_numbers = #tpu.dot_dimension_numbers<[1], [0], [0], [1], [0, 0, 1, 1], [], []>} : vector<8x25xf32>, vector<25x152xf32>, vector<8x152xf32> -> vector<8x152xf32>
    %146 = arith.addf %145, %103 : vector<8x152xf32>
    %147 = vector.extract_strided_slice %146 {offsets = [0, 12], sizes = [8, 128], strides = [1, 1]} : vector<8x152xf32> to vector<8x128xf32>
    %c0_59 = arith.constant 0 : index
    %c0_60 = arith.constant 0 : index
    %c0_61 = arith.constant 0 : index
    %148 = vector.load %arg7[%c0_59, %c0_60, %c0_61] : memref<1x8x128xf32, #tpu.memory_space<vmem>>, vector<1x8x128xf32>
    %149 = vector.shape_cast %148 : vector<1x8x128xf32> to vector<8x128xf32>
    %150 = vector.shape_cast %147 : vector<8x128xf32> to vector<1x8x128xf32>
    tpu.vector_store %arg7[%c0_59, %c0_60, %c0_61], %150 {strides = array<i32>} : memref<1x8x128xf32, #tpu.memory_space<vmem>>, vector<1x8x128xf32>,
    return
  }
  func.func @transform_0(%arg0: i32, %arg1: i32) -> (i32, i32, i32) {
    %c1_i32 = arith.constant 1 : i32
    %0 = arith.muli %arg1, %c1_i32 : i32
    %c1_i32_0 = arith.constant 1 : i32
    %1 = arith.subi %0, %c1_i32_0 : i32
    %c0_i32 = arith.constant 0 : i32
    %2 = arith.maxsi %1, %c0_i32 : i32
    %c0_i32_1 = arith.constant 0 : i32
    %c0_i32_2 = arith.constant 0 : i32
    return %arg0, %c0_i32_1, %2 : i32, i32, i32
  }
  func.func @transform_1(%arg0: i32, %arg1: i32) -> (i32, i32, i32) {
    %c0_i32 = arith.constant 0 : i32
    %c0_i32_0 = arith.constant 0 : i32
    return %arg0, %c0_i32, %arg1 : i32, i32, i32
  }
  func.func @transform_2(%arg0: i32, %arg1: i32) -> (i32, i32, i32) {
    %c1_i32 = arith.constant 1 : i32
    %0 = arith.addi %arg1, %c1_i32 : i32
    %c1_i32_0 = arith.constant 1 : i32
    %1 = arith.muli %0, %c1_i32_0 : i32
    %c2_i32 = arith.constant 2 : i32
    %2 = arith.minsi %1, %c2_i32 : i32
    %c0_i32 = arith.constant 0 : i32
    %c0_i32_1 = arith.constant 0 : i32
    return %arg0, %c0_i32, %2 : i32, i32, i32
  }
  func.func @transform_3(%arg0: i32, %arg1: i32) -> (i32, i32, i32) {
    %c0_i32 = arith.constant 0 : i32
    %c0_i32_0 = arith.constant 0 : i32
    %c0_i32_1 = arith.constant 0 : i32
    %c0_i32_2 = arith.constant 0 : i32
    return %c0_i32, %c0_i32_0, %c0_i32_1 : i32, i32, i32
  }
  func.func @transform_4(%arg0: i32, %arg1: i32) -> (i32, i32, i32) {
    %c0_i32 = arith.constant 0 : i32
    %c0_i32_0 = arith.constant 0 : i32
    %c0_i32_1 = arith.constant 0 : i32
    %c0_i32_2 = arith.constant 0 : i32
    return %c0_i32, %c0_i32_0, %c0_i32_1 : i32, i32, i32
  }
  func.func @transform_5(%arg0: i32, %arg1: i32) -> (i32, i32, i32) {
    %c0_i32 = arith.constant 0 : i32
    %c0_i32_0 = arith.constant 0 : i32
    return %arg0, %c0_i32, %arg1 : i32, i32, i32
  }
}

</mosaic_0001>

<llo_original>
// kernel: tpu_custom_call.1
$region0: #{tpu_custom_call.1}
  #allocation0 [shape = 'u32[]', space=smem, size = 0x4, offset = 0x4, fixed_abs, tag = 'smem constant byte address 0x4 - core index']
  #allocation1 [shape = 'u32[144,128]{1,0:T(1,128)}', space=vmem, size = 0x12000, scoped, tag = 'internal scratch']
  %s0 = inlined_call_operand.hbm [shape: f32[2,8,320], index: 0, kind: input, shape index: {}]
  %s1 = inlined_call_operand.hbm [shape: f32[2,8,320], index: 1, kind: input, shape index: {}]
  %s2 = inlined_call_operand.hbm [shape: f32[2,8,320], index: 2, kind: input, shape index: {}]
  %s3 = inlined_call_operand.hbm [shape: f32[3,8,25], index: 3, kind: input, shape index: {}]
  %s4 = inlined_call_operand.hbm [shape: f32[3,8,25], index: 4, kind: input, shape index: {}]
  %s5 = inlined_call_operand.hbm [shape: f32[2,8,320], index: 5, kind: output, shape index: {}]
  %s6 = sld [smem:[#allocation0]]
  $region73: #{tpu_custom_call.1} parent=0
    _
  %s8 = ssub.s32 1, %s6
  %s9 = scalar_select 0, %s8, %s6
  $region1: #{tpu_custom_call.1} parent=0
    #allocation2 [shape = 'u8[8192]{0}', space=vmem, size = 0x2000, scoped, tag = 'input window, operand 0']
    #allocation3 [shape = 's32[2]{0}', space=sflag, size = 0x8, scoped, tag = 'scoped memory for tpu_custom_call.1']
    #allocation4 [shape = 's32[2]{0}', space=sflag, size = 0x8, scoped, tag = 'scoped memory for tpu_custom_call.1']
    #allocation5 [shape = 'u8[8192]{0}', space=vmem, size = 0x2000, scoped, tag = 'input window, operand 1']
    #allocation6 [shape = 's32[2]{0}', space=sflag, size = 0x8, scoped, tag = 'scoped memory for tpu_custom_call.1']
    #allocation7 [shape = 'u8[8192]{0}', space=vmem, size = 0x2000, scoped, tag = 'input window, operand 2']
    #allocation8 [shape = 'u8[12288]{0}', space=vmem, size = 0x3000, scoped, tag = 'input window, operand 3, single buffered']
    #allocation9 [shape = 's32[1]{0}', space=sflag, size = 0x4, scoped, tag = 'scoped memory for tpu_custom_call.1']
    #allocation10 [shape = 'u8[12288]{0}', space=vmem, size = 0x3000, scoped, tag = 'input window, operand 4, single buffered']
    #allocation11 [shape = 'u8[8192]{0}', space=vmem, size = 0x2000, scoped, tag = 'output window, operand 0']
    %10 = vsyncpa [#allocation3], 0
    %s11 = scalar_lea.sflag [#allocation3], 1
    %12 = vsyncpa %s11, 0
    %13 = vsyncpa [#allocation6], 0
    %s14 = scalar_lea.sflag [#allocation6], 1
    %15 = vsyncpa %s14, 0
    %16 = vsyncpa [#allocation9], 0
    %17 = vsyncpa [#allocation4], 0
    %s18 = scalar_lea.sflag [#allocation4], 1
    %19 = vsyncpa %s18, 0
    loop: start=0, step=1, limit=8
    $region2: #{tpu_custom_call.1} parent=1 // loop_pre_header
      _
    $region3: #{tpu_custom_call.1} parent=1 // loop_header
      %s21 = sphi 0, %s25
      %p22 = scmp.ge.s32.totalorder %s21, 8
      %s28 = sphi 0, %s40
      %s29 = sphi 0, %s36
      %s30 = sphi 0, %s28
      %s31 = sphi 0, %s29
      %s32 = sphi 0, %s30
      %s33 = sphi 0, %s31
      %s51 = sphi 0, %s53
      %s54 = sphi 0, %s51
      %s55 = sphi 0, %s54
      %s71 = sphi 0, %s55
      %s79 = sphi 0, %s81
      %s82 = sphi 0, %s79
      %s83 = sphi 0, %s82
      %s99 = sphi 0, %s83
      %s113 = sphi 0, %s115
      %s116 = sphi 0, %s113
      %s117 = sphi 0, %s116
      %s133 = sphi 0, %s117
      %s137 = sphi 0, %s137
      %s139 = sphi 0, %s137
      %s140 = sphi 0, %s139
      %s154 = sphi 0, %s140
      %s158 = sphi 0, %s158
      %s160 = sphi 0, %s158
      %s161 = sphi 0, %s160
      %s175 = sphi 0, %s161
      %s183 = sphi 0, %s185
      %s186 = sphi 0, %s183
      %s187 = sphi 0, %s186
      %s203 = sphi 0, %s187
    $region4: #{tpu_custom_call.1} parent=1 // loop_header_branch
      %24 = sbr.rel (%p22) target = $region8
    $region5: #{tpu_custom_call.1} parent=1 // loop_body
      %s26 = ssub.s32 %s21, 1
      %s27 = ssub.s32 %s21, 2
      %s34 = sadd.s32 1, %s29
      %p35 = scmp.ge.s32.totalorder %s34, 3
      %s36 = scalar_select %p35, 0, %s34
      %s37 = sadd.s32 1, %s28
      %s38 = scalar_select %p35, %s37, %s28
      %p39 = scmp.ge.s32.totalorder %s38, 2
      %s40 = scalar_select %p39, 0, %s38
      %s41 = ssub.s32 %s29, 1
      %p42 = scmp.gt.s32.totalorder %s41, 0
      %s43 = scalar_select %p42, %s41, 0
      %s44 = ssub.s32 %s36, 1
      %p45 = scmp.gt.s32.totalorder %s44, 0
      %s46 = scalar_select %p45, %s44, 0
      %s47 = ssub.s32 %s28, %s40
      %s48 = ssub.s32 %s43, %s46
      %s49 = sor.u32 %s47, %s48
      %p50 = scmp.eq.s32.totalorder %s49, 0
      %s52 = sadd.s32 %s51, 1
      %s53 = scalar_select %p50, %s51, %s52
      %p56 = pneg %p50
      %p57 = scmp.eq.s32.totalorder %s21, 5
      %p58 = por %p56, %p57
      %p59 = scmp.ne.s32.totalorder %s51, %s54
      %p60 = scmp.eq.s32.totalorder %s21, 0
      %p61 = por %p59, %p60
      %p62 = scmp.ne.s32.totalorder %s51, %s54
      %p63 = scmp.eq.s32.totalorder %s26, 5
      %p64 = por %p62, %p63
      %p65 = scmp.ne.s32.totalorder %s54, %s55
      %p66 = scmp.eq.s32.totalorder %s26, 0
      %p67 = por %p65, %p66
      %p68 = scmp.ne.s32.totalorder %s54, %s55
      %p69 = scmp.eq.s32.totalorder %s27, 5
      %p70 = por %p68, %p69
      %p72 = scmp.ne.s32.totalorder %s55, %s71
      %p73 = scmp.eq.s32.totalorder %s27, 0
      %p74 = por %p72, %p73
      %s75 = ssub.s32 %s28, %s40
      %s76 = ssub.s32 %s29, %s36
      %s77 = sor.u32 %s75, %s76
      %p78 = scmp.eq.s32.totalorder %s77, 0
      %s80 = sadd.s32 %s79, 1
      %s81 = scalar_select %p78, %s79, %s80
      %p84 = pneg %p78
      %p85 = scmp.eq.s32.totalorder %s21, 5
      %p86 = por %p84, %p85
      %p87 = scmp.ne.s32.totalorder %s79, %s82
      %p88 = scmp.eq.s32.totalorder %s21, 0
      %p89 = por %p87, %p88
      %p90 = scmp.ne.s32.totalorder %s79, %s82
      %p91 = scmp.eq.s32.totalorder %s26, 5
      %p92 = por %p90, %p91
      %p93 = scmp.ne.s32.totalorder %s82, %s83
      %p94 = scmp.eq.s32.totalorder %s26, 0
      %p95 = por %p93, %p94
      %p96 = scmp.ne.s32.totalorder %s82, %s83
      %p97 = scmp.eq.s32.totalorder %s27, 5
      %p98 = por %p96, %p97
      %p100 = scmp.ne.s32.totalorder %s83, %s99
      %p101 = scmp.eq.s32.totalorder %s27, 0
      %p102 = por %p100, %p101
      %s103 = sadd.s32 %s29, 1
      %p104 = scmp.lt.s32.totalorder %s103, 2
      %s105 = scalar_select %p104, %s103, 2
      %s106 = sadd.s32 %s36, 1
      %p107 = scmp.lt.s32.totalorder %s106, 2
      %s108 = scalar_select %p107, %s106, 2
      %s109 = ssub.s32 %s28, %s40
      %s110 = ssub.s32 %s105, %s108
      %s111 = sor.u32 %s109, %s110
      %p112 = scmp.eq.s32.totalorder %s111, 0
      %s114 = sadd.s32 %s113, 1
      %s115 = scalar_select %p112, %s113, %s114
      %p118 = pneg %p112
      %p119 = scmp.eq.s32.totalorder %s21, 5
      %p120 = por %p118, %p119
      %p121 = scmp.ne.s32.totalorder %s113, %s116
      %p122 = scmp.eq.s32.totalorder %s21, 0
      %p123 = por %p121, %p122
      %p124 = scmp.ne.s32.totalorder %s113, %s116
      %p125 = scmp.eq.s32.totalorder %s26, 5
      %p126 = por %p124, %p125
      %p127 = scmp.ne.s32.totalorder %s116, %s117
      %p128 = scmp.eq.s32.totalorder %s26, 0
      %p129 = por %p127, %p128
      %p130 = scmp.ne.s32.totalorder %s116, %s117
      %p131 = scmp.eq.s32.totalorder %s27, 5
      %p132 = por %p130, %p131
      %p134 = scmp.ne.s32.totalorder %s117, %s133
      %p135 = scmp.eq.s32.totalorder %s27, 0
      %p136 = por %p134, %p135
      %s138 = sadd.s32 %s137, 1
      %p141 = scmp.eq.s32.totalorder %s21, 5
      %p142 = scmp.ne.s32.totalorder %s137, %s139
      %p143 = scmp.eq.s32.totalorder %s21, 0
      %p144 = por %p142, %p143
      %p145 = scmp.ne.s32.totalorder %s137, %s139
      %p146 = scmp.eq.s32.totalorder %s26, 5
      %p147 = por %p145, %p146
      %p148 = scmp.ne.s32.totalorder %s139, %s140
      %p149 = scmp.eq.s32.totalorder %s26, 0
      %p150 = por %p148, %p149
      %p151 = scmp.ne.s32.totalorder %s139, %s140
      %p152 = scmp.eq.s32.totalorder %s27, 5
      %p153 = por %p151, %p152
      %p155 = scmp.ne.s32.totalorder %s140, %s154
      %p156 = scmp.eq.s32.totalorder %s27, 0
      %p157 = por %p155, %p156
      %s159 = sadd.s32 %s158, 1
      %p162 = scmp.eq.s32.totalorder %s21, 5
      %p163 = scmp.ne.s32.totalorder %s158, %s160
      %p164 = scmp.eq.s32.totalorder %s21, 0
      %p165 = por %p163, %p164
      %p166 = scmp.ne.s32.totalorder %s158, %s160
      %p167 = scmp.eq.s32.totalorder %s26, 5
      %p168 = por %p166, %p167
      %p169 = scmp.ne.s32.totalorder %s160, %s161
      %p170 = scmp.eq.s32.totalorder %s26, 0
      %p171 = por %p169, %p170
      %p172 = scmp.ne.s32.totalorder %s160, %s161
      %p173 = scmp.eq.s32.totalorder %s27, 5
      %p174 = por %p172, %p173
      %p176 = scmp.ne.s32.totalorder %s161, %s175
      %p177 = scmp.eq.s32.totalorder %s27, 0
      %p178 = por %p176, %p177
      %s179 = ssub.s32 %s28, %s40
      %s180 = ssub.s32 %s29, %s36
      %s181 = sor.u32 %s179, %s180
      %p182 = scmp.eq.s32.totalorder %s181, 0
      %s184 = sadd.s32 %s183, 1
      %s185 = scalar_select %p182, %s183, %s184
      %p188 = pneg %p182
      %p189 = scmp.eq.s32.totalorder %s21, 5
      %p190 = por %p188, %p189
      %p191 = scmp.ne.s32.totalorder %s183, %s186
      %p192 = scmp.eq.s32.totalorder %s21, 0
      %p193 = por %p191, %p192
      %p194 = scmp.ne.s32.totalorder %s183, %s186
      %p195 = scmp.eq.s32.totalorder %s26, 5
      %p196 = por %p194, %p195
      %p197 = scmp.ne.s32.totalorder %s186, %s187
      %p198 = scmp.eq.s32.totalorder %s26, 0
      %p199 = por %p197, %p198
      %p200 = scmp.ne.s32.totalorder %s186, %s187
      %p201 = scmp.eq.s32.totalorder %s27, 5
      %p202 = por %p200, %p201
      %p204 = scmp.ne.s32.totalorder %s187, %s203
      %p205 = scmp.eq.s32.totalorder %s27, 0
      %p206 = por %p204, %p205
      %p207 = scmp.le.s32.totalorder 1, %s21
      %p208 = scmp.lt.s32.totalorder %s21, 7
      %p209 = pnand %p207, %p208
      %p210 = pneg %p209
      // Predicated region
      $region9: #{tpu_custom_call.1} parent=5 // pred_check
        _
      $region10: #{tpu_custom_call.1} parent=5 // pred_check_branch
        %212 = sbr.rel (%p209) target = $region12
      $region11: #{tpu_custom_call.1} parent=5 // pred_region
        %s213 = ssub.s32 %s21, 1
        // Predicated region
        $region13: #{tpu_custom_call.1} parent=11 // pred_check
          %p214 = pneg %p150
        $region14: #{tpu_custom_call.1} parent=11 // pred_check_branch
          %216 = sbr.rel (%p214) target = $region16
        $region15: #{tpu_custom_call.1} parent=11 // pred_region
          %s218 = ssub.s32 384, 384
          %219 = vsyncadd [#allocation9], %s218
          %s220 = sshll.u32 [#allocation8], 4
          %s221 = int_to_ptr.vmem [resolvable:$true] %s220
          %226 = dma.hbm_to_vmem [thread:$0]  %s3, 384, %s221, [#allocation9], 128, 128, 8
        $region16: #{tpu_custom_call.1} parent=11 // pred_fallthru
          _
        // Predicated region
        $region17: #{tpu_custom_call.1} parent=11 // pred_check
          %p227 = pneg %p171
        $region18: #{tpu_custom_call.1} parent=11 // pred_check_branch
          %229 = sbr.rel (%p227) target = $region20
        $region19: #{tpu_custom_call.1} parent=11 // pred_region
          %s231 = ssub.s32 384, 384
          %232 = vsyncadd [#allocation9], %s231
          %s233 = sshll.u32 [#allocation10], 4
          %s234 = int_to_ptr.vmem [resolvable:$true] %s233
          %239 = dma.hbm_to_vmem [thread:$0]  %s4, 384, %s234, [#allocation9], 128, 128, 8
        $region20: #{tpu_custom_call.1} parent=11 // pred_fallthru
          _
      $region12: #{tpu_custom_call.1} parent=5 // pred_fallthru
        _
      %p240 = scmp.lt.s32.totalorder %s21, 6
      // Predicated region
      $region21: #{tpu_custom_call.1} parent=5 // pred_check
        %p241 = pneg %p240
      $region22: #{tpu_custom_call.1} parent=5 // pred_check_branch
        %243 = sbr.rel (%p241) target = $region24
      $region23: #{tpu_custom_call.1} parent=5 // pred_region
        // Predicated region
        $region25: #{tpu_custom_call.1} parent=23 // pred_check
          %p244 = pneg %p61
        $region26: #{tpu_custom_call.1} parent=23 // pred_check_branch
          %246 = sbr.rel (%p244) target = $region28
        $region27: #{tpu_custom_call.1} parent=23 // pred_region
          %s247 = sand.u32 %s51, 1
          %s248 = scalar_lea.sflag [#allocation3], %s247
          %s249 = sand.u32 %s51, 1
          %s250 = smul.addr %s249, 8
          %s251 = scalar_lea.vmem [#allocation2], %s250
          %s252 = ssub.s32 %s29, 1
          %p253 = scmp.gt.s32.totalorder %s252, 0
          %s254 = scalar_select %p253, %s252, 0
          %s256 = ssub.s32 128, 128
          %257 = vsyncadd %s248, %s256
          %s258 = smul.addr %s28, 3
          %s259 = sadd.s32 %s254, %s258
          %s260 = smul.addr %s259, 128
          %s261 = scalar_lea.hbm %s0, %s260
          %s263 = sshll.u32 %s251, 4
          %s264 = int_to_ptr.vmem [resolvable:$true] %s263
          %266 = dma.hbm_to_vmem [thread:$0]  %s261, 128, %s264, %s248
        $region28: #{tpu_custom_call.1} parent=23 // pred_fallthru
          _
        // Predicated region
        $region29: #{tpu_custom_call.1} parent=23 // pred_check
          %p267 = pneg %p89
        $region30: #{tpu_custom_call.1} parent=23 // pred_check_branch
          %269 = sbr.rel (%p267) target = $region32
        $region31: #{tpu_custom_call.1} parent=23 // pred_region
          %s270 = sand.u32 %s21, 1
          %s271 = scalar_lea.sflag [#allocation6], %s270
          %s272 = sand.u32 %s79, 1
          %s273 = smul.addr %s272, 8
          %s274 = scalar_lea.vmem [#allocation5], %s273
          %s276 = ssub.s32 128, 128
          %277 = vsyncadd %s271, %s276
          %s278 = smul.addr %s28, 3
          %s279 = sadd.s32 %s29, %s278
          %s280 = smul.addr %s279, 128
          %s281 = scalar_lea.hbm %s1, %s280
          %s283 = sshll.u32 %s274, 4
          %s284 = int_to_ptr.vmem [resolvable:$true] %s283
          %286 = dma.hbm_to_vmem [thread:$0]  %s281, 128, %s284, %s271
        $region32: #{tpu_custom_call.1} parent=23 // pred_fallthru
          _
        // Predicated region
        $region33: #{tpu_custom_call.1} parent=23 // pred_check
          %p287 = pneg %p123
        $region34: #{tpu_custom_call.1} parent=23 // pred_check_branch
          %289 = sbr.rel (%p287) target = $region36
        $region35: #{tpu_custom_call.1} parent=23 // pred_region
          %s290 = sand.u32 %s21, 1
          %s291 = scalar_lea.sflag [#allocation6], %s290
          %s292 = sand.u32 %s113, 1
          %s293 = smul.addr %s292, 8
          %s294 = scalar_lea.vmem [#allocation7], %s293
          %s295 = sadd.s32 %s29, 1
          %p296 = scmp.lt.s32.totalorder %s295, 2
          %s297 = scalar_select %p296, %s295, 2
          %s299 = ssub.s32 128, 128
          %300 = vsyncadd %s291, %s299
          %s301 = smul.addr %s28, 3
          %s302 = sadd.s32 %s297, %s301
          %s303 = smul.addr %s302, 128
          %s304 = scalar_lea.hbm %s2, %s303
          %s306 = sshll.u32 %s294, 4
          %s307 = int_to_ptr.vmem [resolvable:$true] %s306
          %309 = dma.hbm_to_vmem [thread:$0]  %s304, 128, %s307, %s291
        $region36: #{tpu_custom_call.1} parent=23 // pred_fallthru
          _
      $region24: #{tpu_custom_call.1} parent=5 // pred_fallthru
        _
      %p310 = scmp.le.s32.totalorder 1, %s21
      %p311 = scmp.lt.s32.totalorder %s21, 7
      %p312 = pnand %p310, %p311
      %p313 = pneg %p312
      // Predicated region
      $region37: #{tpu_custom_call.1} parent=5 // pred_check
        _
      $region38: #{tpu_custom_call.1} parent=5 // pred_check_branch
        %315 = sbr.rel (%p312) target = $region40
      $region39: #{tpu_custom_call.1} parent=5 // pred_region
        %s316 = ssub.s32 %s21, 1
        %s317 = sand.u32 %s54, 1
        %s318 = scalar_lea.sflag [#allocation3], %s317
        %s319 = sand.u32 %s54, 1
        %s320 = smul.addr %s319, 8
        %s321 = scalar_lea.vmem [#allocation2], %s320
        // Predicated region
        $region41: #{tpu_custom_call.1} parent=39 // pred_check
          %p322 = pneg %p67
        $region42: #{tpu_custom_call.1} parent=39 // pred_check_branch
          %324 = sbr.rel (%p322) target = $region44
        $region43: #{tpu_custom_call.1} parent=39 // pred_region
          %325 = dma.done %s318, 128
        $region44: #{tpu_custom_call.1} parent=39 // pred_fallthru
          _
        %s326 = sand.u32 %s26, 1
        %s327 = scalar_lea.sflag [#allocation6], %s326
        %s328 = sand.u32 %s82, 1
        %s329 = smul.addr %s328, 8
        %s330 = scalar_lea.vmem [#allocation5], %s329
        // Predicated region
        $region45: #{tpu_custom_call.1} parent=39 // pred_check
          %p331 = pneg %p95
        $region46: #{tpu_custom_call.1} parent=39 // pred_check_branch
          %333 = sbr.rel (%p331) target = $region48
        $region47: #{tpu_custom_call.1} parent=39 // pred_region
          %334 = dma.done %s327, 128
        $region48: #{tpu_custom_call.1} parent=39 // pred_fallthru
          _
        %s335 = sand.u32 %s26, 1
        %s336 = scalar_lea.sflag [#allocation6], %s335
        %s337 = sand.u32 %s116, 1
        %s338 = smul.addr %s337, 8
        %s339 = scalar_lea.vmem [#allocation7], %s338
        // Predicated region
        $region49: #{tpu_custom_call.1} parent=39 // pred_check
          %p340 = pneg %p129
        $region50: #{tpu_custom_call.1} parent=39 // pred_check_branch
          %342 = sbr.rel (%p340) target = $region52
        $region51: #{tpu_custom_call.1} parent=39 // pred_region
          %343 = dma.done %s336, 128
        $region52: #{tpu_custom_call.1} parent=39 // pred_fallthru
          _
        // Predicated region
        $region53: #{tpu_custom_call.1} parent=39 // pred_check
          %p344 = pneg %p150
        $region54: #{tpu_custom_call.1} parent=39 // pred_check_branch
          %346 = sbr.rel (%p344) target = $region56
        $region55: #{tpu_custom_call.1} parent=39 // pred_region
          %347 = dma.done [#allocation9], 384
        $region56: #{tpu_custom_call.1} parent=39 // pred_fallthru
          _
        // Predicated region
        $region57: #{tpu_custom_call.1} parent=39 // pred_check
          %p348 = pneg %p171
        $region58: #{tpu_custom_call.1} parent=39 // pred_check_branch
          %350 = sbr.rel (%p348) target = $region60
        $region59: #{tpu_custom_call.1} parent=39 // pred_region
          %351 = dma.done [#allocation9], 384
        $region60: #{tpu_custom_call.1} parent=39 // pred_fallthru
          _
        %s352 = sand.u32 %s54, 1
        %s353 = scalar_lea.sflag [#allocation3], %s352
        %s354 = sand.u32 %s54, 1
        %s355 = smul.addr %s354, 8
        %s356 = scalar_lea.vmem [#allocation2], %s355
        %p357 = pneg %p67
        %p358 = pneg %p64
        %s359 = sand.u32 %s26, 1
        %s360 = scalar_lea.sflag [#allocation6], %s359
        %s361 = sand.u32 %s82, 1
        %s362 = smul.addr %s361, 8
        %s363 = scalar_lea.vmem [#allocation5], %s362
        %p364 = pneg %p95
        %p365 = pneg %p92
        %s366 = sand.u32 %s26, 1
        %s367 = scalar_lea.sflag [#allocation6], %s366
        %s368 = sand.u32 %s116, 1
        %s369 = smul.addr %s368, 8
        %s370 = scalar_lea.vmem [#allocation7], %s369
        %p371 = pneg %p129
        %p372 = pneg %p126
        %p373 = pneg %p150
        %p374 = pneg %p147
        %p375 = pneg %p171
        %p376 = pneg %p168
        %p377 = pneg %p199
        %p378 = pneg %p196
        %s379 = sand.u32 %s186, 1
        %s380 = scalar_lea.sflag [#allocation4], %s379
        %s381 = sand.u32 %s186, 1
        %s382 = smul.addr %s381, 8
        %s383 = scalar_lea.vmem [#allocation11], %s382
        %s384 = ssub.s32 %s31, 1
        %p385 = scmp.gt.s32.totalorder %s384, 0
        %s386 = scalar_select %p385, %s384, 0
        %s387 = sadd.s32 %s31, 1
        %p388 = scmp.lt.s32.totalorder %s387, 2
        %s389 = scalar_select %p388, %s387, 2
        %v390 = vld [vmem:[%s321] sm:$0xff]
        %v391 = vld [vmem:[%s330] sm:$0xff]
        %v392 = vld [vmem:[%s339] sm:$0xff]
        %394 = vrot.lane.b32.xlu0 %v390, 12
        %v395 = vpop.permute.xlu0 %394
        %398 = vrot.lane.b32.xlu0 %v391, 12
        %v399 = vpop.permute.xlu0 %398
        %402 = vrot.lane.b32.xlu0 %v392, 12
        %v403 = vpop.permute.xlu0 %402
        %vm405 = vcmask 97280
        %v406 = vsel %vm405, %v395, %v399
        %v407 = vsel %vm405, %v399, %v403
        %s408 = smul.u32 %s31, 128
        %s409 = ssub.s32 %s408, 12
        %v410 = vlaneseq
        %v411 = vand.u32 %v410, 127
        %v412 = vadd.s32 %v411, 128
        %v413 = vstv %s409
        %v414 = vadd.s32 %v413, %v411
        %v415 = vadd.s32 %v413, %v412
        %vm416 = vcmp.ge.s32.totalorder %v414, 0
        %vm417 = vcmp.ge.s32.totalorder %v415, 0
        %vm418 = vcmp.lt.s32.totalorder %v414, 320
        %vm419 = vcmp.lt.s32.totalorder %v415, 320
        %vm420 = vmand %vm416, %vm418
        %vm421 = vmand %vm417, %vm419
        %vm422 = vcmp.gt.f32.partialorder %v406, 0.0
        %vm423 = vcmp.gt.f32.partialorder %v407, 0.0
        %v424 = vmul.f32 %v406, 0.1
        %v425 = vmul.f32 %v407, 0.1
        %v426 = vsel %vm422, %v406, %v424
        %v427 = vsel %vm423, %v407, %v425
        %v428 = vsel %vm420, 1, 0
        %v429 = vsel %vm421, 1, 0
        %vm430 = vcmp.eq.s32.totalorder %v428, 1
        %vm431 = vcmp.eq.s32.totalorder %v429, 1
        %v432 = vsel %vm430, %v426, 0.0
        %v433 = vsel %vm431, %v427, 0.0
        %436 = vrot.lane.b32.xlu0 %v432, 1
        %v437 = vpop.permute.xlu0 %436
        %438 = vrot.lane.b32.xlu0 %v433, 1
        %v439 = vpop.permute.xlu0 %438
        %vm440 = vcmask 7168
        %v441 = vsel %vm440, %v437, %v439
        %v444 = vsel %vm440, 0.0, %v437
        %445 = vrot.lane.b32.xlu0 %v432, 127
        %v446 = vpop.permute.xlu0 %445
        %447 = vrot.lane.b32.xlu0 %v433, 127
        %v448 = vpop.permute.xlu0 %447
        %vm449 = vcmask 1039360
        %v450 = vsel %vm449, %v446, %v448
        %vm453 = vcmask 187392
        %v454 = vsel %vm453, %v448, 0.0
        %v455 = vld [vmem:[#allocation8] sm:$0xff]
        %vm456 = vcmask 203776
        %v458 = vsel %vm456, %v455, 0
        %vm460 = vcmask 1040384
        %v462 = vsel %vm460, 1.0, 0
        %464 = vmatprep.subr.mxu0 %v441
        %465 = vmatpush1.msra.mxu0 %v444
        %466 = vmatprep.subr.mxu0 %v433
        %467 = vmatpush1.msra.mxu0 %v432
        %468 = vmatprep.subr.mxu0 %v454
        %469 = vmatpush1.msra.mxu0 %v450
        %470 = vmatprep.subr.mxu0 %v462
        %471 = vmatpush1.msra.mxu0 %v462
        %472 = vmatprep.subr.mxu0 0.0
        %473 = vmatpush1.msra.mxu0 0.0
        %474 = vmatprep.subr.mxu0 0.0
        %475 = vmatpush1.msra.mxu0 0.0
        %476 = vmatprep.subr.mxu0 0.0
        %477 = vmatpush1.msra.mxu0 0.0
        %478 = vmatprep.subr.mxu0 0.0
        %479 = vmatpush1.msra.mxu0 0.0
        %480 = vmatprep.subr.mxu0 0.0
        %481 = vmatpush1.msra.mxu0 0.0
        %482 = vmatprep.subr.mxu0 0.0
        %483 = vmatpush1.msra.mxu0 0.0
        %484 = vmatprep.subr.mxu0 0.0
        %485 = vmatpush1.msra.mxu0 0.0
        %486 = vmatprep.subr.mxu0 0.0
        %487 = vmatpush1.msra.mxu0 0.0
        %488 = vmatprep.subr.mxu0 0.0
        %489 = vmatpush1.msra.mxu0 0.0
        %490 = vmatprep.subr.mxu0 0.0
        %491 = vmatpush1.msra.mxu0 0.0
        %492 = vmatprep.subr.mxu0 0.0
        %493 = vmatpush1.msra.mxu0 0.0
        %494 = vmatprep.subr.mxu0 0.0
        %495 = vmatpush1.msra.mxu0 0.0
        %496 = vmatprep.subr.mxu0 0.0
        %497 = vmatpush1.msra.mxu0 0.0
        %498 = vmatprep.subr.mxu0 0.0
        %499 = vmatpush1.msra.mxu0 0.0
        %500 = vmatprep.subr.mxu0 0.0
        %501 = vmatpush1.msra.mxu0 0.0
        %502 = vmatprep.subr.mxu0 0.0
        %503 = vmatpush1.msra.mxu0 0.0
        %504 = vmatprep.subr.mxu0 0.0
        %505 = vmatpush1.msra.mxu0 0.0
        %506 = vmatprep.subr.mxu0 0.0
        %507 = vmatpush1.msra.mxu0 0.0
        %508 = vmatprep.subr.mxu0 0.0
        %509 = vmatpush1.msra.mxu0 0.0
        %510 = vmatprep.subr.mxu0 0.0
        %511 = vmatpush1.msra.mxu0 0.0
        %512 = vmatprep.subr.mxu0 0.0
        %513 = vmatpush1.msra.mxu0 0.0
        %514 = vmatprep.subr.mxu0 0.0
        %515 = vmatpush1.msra.mxu0 0.0
        %516 = vmatprep.subr.mxu0 0.0
        %517 = vmatpush1.msra.mxu0 0.0
        %518 = vmatprep.subr.mxu0 0.0
        %519 = vmatpush1.msra.mxu0 0.0
        %520 = vmatprep.subr.mxu0 0.0
        %521 = vmatpush1.msra.mxu0 0.0
        %522 = vmatprep.subr.mxu0 0.0
        %523 = vmatpush1.msra.mxu0 0.0
        %524 = vmatprep.subr.mxu0 0.0
        %525 = vmatpush1.msra.mxu0 0.0
        %526 = vmatprep.subr.mxu0 0.0
        %527 = vmatpush1.msra.mxu0 0.0
        %528 = vmatprep.mubr.f32.mxu0 0.0
        %529 = vmatmul.mubr.f32.gmra.mrb[0].mxu0 %v458
        %v530 = vpop.f32.mrb[0].mxu0
        %v531 = vadd.f32 0.0, %v530
        %v532 = vpop.f32.mrb[0].mxu0
        %v533 = vadd.f32 0.0, %v532
        %534 = vdwg.mxu0
        %vm535 = vcmp.gt.f32.partialorder %v531, 0.0
        %vm536 = vcmp.gt.f32.partialorder %v533, 0.0
        %v537 = vmul.f32 %v531, 0.1
        %v538 = vmul.f32 %v533, 0.1
        %v539 = vsel %vm535, %v531, %v537
        %v540 = vsel %vm536, %v533, %v538
        %v541 = vsel %vm430, %v539, 0.0
        %v542 = vsel %vm431, %v540, 0.0
        %545 = vrot.lane.b32.xlu0 %v541, 1
        %v546 = vpop.permute.xlu0 %545
        %547 = vrot.lane.b32.xlu0 %v542, 1
        %v548 = vpop.permute.xlu0 %547
        %v549 = vsel %vm440, %v546, %v548
        %v552 = vsel %vm440, 0.0, %v546
        %553 = vrot.lane.b32.xlu0 %v541, 127
        %v554 = vpop.permute.xlu0 %553
        %555 = vrot.lane.b32.xlu0 %v542, 127
        %v556 = vpop.permute.xlu0 %555
        %v557 = vsel %vm449, %v554, %v556
        %v560 = vsel %vm453, %v556, 0.0
        %v561 = vld [vmem:[#allocation10] sm:$0xff]
        %v563 = vsel %vm456, %v561, 0
        %565 = vmatprep.subr.mxu0 %v549
        %566 = vmatpush1.msra.mxu0 %v552
        %567 = vmatprep.subr.mxu0 %v542
        %568 = vmatpush1.msra.mxu0 %v541
        %569 = vmatprep.subr.mxu0 %v560
        %570 = vmatpush1.msra.mxu0 %v557
        %571 = vmatprep.subr.mxu0 %v462
        %572 = vmatpush1.msra.mxu0 %v462
        %573 = vmatprep.subr.mxu0 0.0
        %574 = vmatpush1.msra.mxu0 0.0
        %575 = vmatprep.subr.mxu0 0.0
        %576 = vmatpush1.msra.mxu0 0.0
        %577 = vmatprep.subr.mxu0 0.0
        %578 = vmatpush1.msra.mxu0 0.0
        %579 = vmatprep.subr.mxu0 0.0
        %580 = vmatpush1.msra.mxu0 0.0
        %581 = vmatprep.subr.mxu0 0.0
        %582 = vmatpush1.msra.mxu0 0.0
        %583 = vmatprep.subr.mxu0 0.0
        %584 = vmatpush1.msra.mxu0 0.0
        %585 = vmatprep.subr.mxu0 0.0
        %586 = vmatpush1.msra.mxu0 0.0
        %587 = vmatprep.subr.mxu0 0.0
        %588 = vmatpush1.msra.mxu0 0.0
        %589 = vmatprep.subr.mxu0 0.0
        %590 = vmatpush1.msra.mxu0 0.0
        %591 = vmatprep.subr.mxu0 0.0
        %592 = vmatpush1.msra.mxu0 0.0
        %593 = vmatprep.subr.mxu0 0.0
        %594 = vmatpush1.msra.mxu0 0.0
        %595 = vmatprep.subr.mxu0 0.0
        %596 = vmatpush1.msra.mxu0 0.0
        %597 = vmatprep.subr.mxu0 0.0
        %598 = vmatpush1.msra.mxu0 0.0
        %599 = vmatprep.subr.mxu0 0.0
        %600 = vmatpush1.msra.mxu0 0.0
        %601 = vmatprep.subr.mxu0 0.0
        %602 = vmatpush1.msra.mxu0 0.0
        %603 = vmatprep.subr.mxu0 0.0
        %604 = vmatpush1.msra.mxu0 0.0
        %605 = vmatprep.subr.mxu0 0.0
        %606 = vmatpush1.msra.mxu0 0.0
        %607 = vmatprep.subr.mxu0 0.0
        %608 = vmatpush1.msra.mxu0 0.0
        %609 = vmatprep.subr.mxu0 0.0
        %610 = vmatpush1.msra.mxu0 0.0
        %611 = vmatprep.subr.mxu0 0.0
        %612 = vmatpush1.msra.mxu0 0.0
        %613 = vmatprep.subr.mxu0 0.0
        %614 = vmatpush1.msra.mxu0 0.0
        %615 = vmatprep.subr.mxu0 0.0
        %616 = vmatpush1.msra.mxu0 0.0
        %617 = vmatprep.subr.mxu0 0.0
        %618 = vmatpush1.msra.mxu0 0.0
        %619 = vmatprep.subr.mxu0 0.0
        %620 = vmatpush1.msra.mxu0 0.0
        %621 = vmatprep.subr.mxu0 0.0
        %622 = vmatpush1.msra.mxu0 0.0
        %623 = vmatprep.subr.mxu0 0.0
        %624 = vmatpush1.msra.mxu0 0.0
        %625 = vmatprep.subr.mxu0 0.0
        %626 = vmatpush1.msra.mxu0 0.0
        %627 = vmatprep.subr.mxu0 0.0
        %628 = vmatpush1.msra.mxu0 0.0
        %629 = vmatprep.mubr.f32.mxu0 0.0
        %630 = vmatmul.mubr.f32.gmra.mrb[0].mxu0 %v563
        %v631 = vpop.f32.mrb[0].mxu0
        %v632 = vadd.f32 %v406, %v631
        %v633 = vpop.f32.mrb[0].mxu0
        %v634 = vadd.f32 %v407, %v633
        %635 = vdwg.mxu0
        %vm636 = vcmp.gt.f32.partialorder %v632, 0.0
        %vm637 = vcmp.gt.f32.partialorder %v634, 0.0
        %v638 = vmul.f32 %v632, 0.1
        %v639 = vmul.f32 %v634, 0.1
        %v640 = vsel %vm636, %v632, %v638
        %v641 = vsel %vm637, %v634, %v639
        %v642 = vsel %vm430, %v640, 0.0
        %v643 = vsel %vm431, %v641, 0.0
        %646 = vrot.lane.b32.xlu0 %v642, 3
        %v647 = vpop.permute.xlu0 %646
        %648 = vrot.lane.b32.xlu0 %v643, 3
        %v649 = vpop.permute.xlu0 %648
        %vm650 = vcmask 23552
        %v651 = vsel %vm650, %v647, %v649
        %v654 = vsel %vm650, 0.0, %v647
        %655 = vrot.lane.b32.xlu0 %v642, 125
        %v656 = vpop.permute.xlu0 %655
        %657 = vrot.lane.b32.xlu0 %v643, 125
        %v658 = vpop.permute.xlu0 %657
        %vm659 = vcmask 1022976
        %v660 = vsel %vm659, %v656, %v658
        %vm663 = vcmask 171008
        %v664 = vsel %vm663, %v658, 0.0
        %s665 = scalar_lea.vmem [#allocation8], 8
        %v666 = vld [vmem:[%s665] sm:$0xff]
        %v668 = vsel %vm456, %v666, 0
        %670 = vmatprep.subr.mxu0 %v651
        %671 = vmatpush1.msra.mxu0 %v654
        %672 = vmatprep.subr.mxu0 %v643
        %673 = vmatpush1.msra.mxu0 %v642
        %674 = vmatprep.subr.mxu0 %v664
        %675 = vmatpush1.msra.mxu0 %v660
        %676 = vmatprep.subr.mxu0 %v462
        %677 = vmatpush1.msra.mxu0 %v462
        %678 = vmatprep.subr.mxu0 0.0
        %679 = vmatpush1.msra.mxu0 0.0
        %680 = vmatprep.subr.mxu0 0.0
        %681 = vmatpush1.msra.mxu0 0.0
        %682 = vmatprep.subr.mxu0 0.0
        %683 = vmatpush1.msra.mxu0 0.0
        %684 = vmatprep.subr.mxu0 0.0
        %685 = vmatpush1.msra.mxu0 0.0
        %686 = vmatprep.subr.mxu0 0.0
        %687 = vmatpush1.msra.mxu0 0.0
        %688 = vmatprep.subr.mxu0 0.0
        %689 = vmatpush1.msra.mxu0 0.0
        %690 = vmatprep.subr.mxu0 0.0
        %691 = vmatpush1.msra.mxu0 0.0
        %692 = vmatprep.subr.mxu0 0.0
        %693 = vmatpush1.msra.mxu0 0.0
        %694 = vmatprep.subr.mxu0 0.0
        %695 = vmatpush1.msra.mxu0 0.0
        %696 = vmatprep.subr.mxu0 0.0
        %697 = vmatpush1.msra.mxu0 0.0
        %698 = vmatprep.subr.mxu0 0.0
        %699 = vmatpush1.msra.mxu0 0.0
        %700 = vmatprep.subr.mxu0 0.0
        %701 = vmatpush1.msra.mxu0 0.0
        %702 = vmatprep.subr.mxu0 0.0
        %703 = vmatpush1.msra.mxu0 0.0
        %704 = vmatprep.subr.mxu0 0.0
        %705 = vmatpush1.msra.mxu0 0.0
        %706 = vmatprep.subr.mxu0 0.0
        %707 = vmatpush1.msra.mxu0 0.0
        %708 = vmatprep.subr.mxu0 0.0
        %709 = vmatpush1.msra.mxu0 0.0
        %710 = vmatprep.subr.mxu0 0.0
        %711 = vmatpush1.msra.mxu0 0.0
        %712 = vmatprep.subr.mxu0 0.0
        %713 = vmatpush1.msra.mxu0 0.0
        %714 = vmatprep.subr.mxu0 0.0
        %715 = vmatpush1.msra.mxu0 0.0
        %716 = vmatprep.subr.mxu0 0.0
        %717 = vmatpush1.msra.mxu0 0.0
        %718 = vmatprep.subr.mxu0 0.0
        %719 = vmatpush1.msra.mxu0 0.0
        %720 = vmatprep.subr.mxu0 0.0
        %721 = vmatpush1.msra.mxu0 0.0
        %722 = vmatprep.subr.mxu0 0.0
        %723 = vmatpush1.msra.mxu0 0.0
        %724 = vmatprep.subr.mxu0 0.0
        %725 = vmatpush1.msra.mxu0 0.0
        %726 = vmatprep.subr.mxu0 0.0
        %727 = vmatpush1.msra.mxu0 0.0
        %728 = vmatprep.subr.mxu0 0.0
        %729 = vmatpush1.msra.mxu0 0.0
        %730 = vmatprep.subr.mxu0 0.0
        %731 = vmatpush1.msra.mxu0 0.0
        %732 = vmatprep.subr.mxu0 0.0
        %733 = vmatpush1.msra.mxu0 0.0
        %734 = vmatprep.mubr.f32.mxu0 0.0
        %735 = vmatmul.mubr.f32.gmra.mrb[0].mxu0 %v668
        %v736 = vpop.f32.mrb[0].mxu0
        %v737 = vadd.f32 0.0, %v736
        %v738 = vpop.f32.mrb[0].mxu0
        %v739 = vadd.f32 0.0, %v738
        %740 = vdwg.mxu0
        %vm741 = vcmp.gt.f32.partialorder %v737, 0.0
        %vm742 = vcmp.gt.f32.partialorder %v739, 0.0
        %v743 = vmul.f32 %v737, 0.1
        %v744 = vmul.f32 %v739, 0.1
        %v745 = vsel %vm741, %v737, %v743
        %v746 = vsel %vm742, %v739, %v744
        %v747 = vsel %vm430, %v745, 0.0
        %v748 = vsel %vm431, %v746, 0.0
        %751 = vrot.lane.b32.xlu0 %v747, 1
        %v752 = vpop.permute.xlu0 %751
        %753 = vrot.lane.b32.xlu0 %v748, 1
        %v754 = vpop.permute.xlu0 %753
        %v755 = vsel %vm440, %v752, %v754
        %v758 = vsel %vm440, 0.0, %v752
        %759 = vrot.lane.b32.xlu0 %v747, 127
        %v760 = vpop.permute.xlu0 %759
        %761 = vrot.lane.b32.xlu0 %v748, 127
        %v762 = vpop.permute.xlu0 %761
        %v763 = vsel %vm449, %v760, %v762
        %v766 = vsel %vm453, %v762, 0.0
        %s767 = scalar_lea.vmem [#allocation10], 8
        %v768 = vld [vmem:[%s767] sm:$0xff]
        %v770 = vsel %vm456, %v768, 0
        %772 = vmatprep.subr.mxu0 %v755
        %773 = vmatpush1.msra.mxu0 %v758
        %774 = vmatprep.subr.mxu0 %v748
        %775 = vmatpush1.msra.mxu0 %v747
        %776 = vmatprep.subr.mxu0 %v766
        %777 = vmatpush1.msra.mxu0 %v763
        %778 = vmatprep.subr.mxu0 %v462
        %779 = vmatpush1.msra.mxu0 %v462
        %780 = vmatprep.subr.mxu0 0.0
        %781 = vmatpush1.msra.mxu0 0.0
        %782 = vmatprep.subr.mxu0 0.0
        %783 = vmatpush1.msra.mxu0 0.0
        %784 = vmatprep.subr.mxu0 0.0
        %785 = vmatpush1.msra.mxu0 0.0
        %786 = vmatprep.subr.mxu0 0.0
        %787 = vmatpush1.msra.mxu0 0.0
        %788 = vmatprep.subr.mxu0 0.0
        %789 = vmatpush1.msra.mxu0 0.0
        %790 = vmatprep.subr.mxu0 0.0
        %791 = vmatpush1.msra.mxu0 0.0
        %792 = vmatprep.subr.mxu0 0.0
        %793 = vmatpush1.msra.mxu0 0.0
        %794 = vmatprep.subr.mxu0 0.0
        %795 = vmatpush1.msra.mxu0 0.0
        %796 = vmatprep.subr.mxu0 0.0
        %797 = vmatpush1.msra.mxu0 0.0
        %798 = vmatprep.subr.mxu0 0.0
        %799 = vmatpush1.msra.mxu0 0.0
        %800 = vmatprep.subr.mxu0 0.0
        %801 = vmatpush1.msra.mxu0 0.0
        %802 = vmatprep.subr.mxu0 0.0
        %803 = vmatpush1.msra.mxu0 0.0
        %804 = vmatprep.subr.mxu0 0.0
        %805 = vmatpush1.msra.mxu0 0.0
        %806 = vmatprep.subr.mxu0 0.0
        %807 = vmatpush1.msra.mxu0 0.0
        %808 = vmatprep.subr.mxu0 0.0
        %809 = vmatpush1.msra.mxu0 0.0
        %810 = vmatprep.subr.mxu0 0.0
        %811 = vmatpush1.msra.mxu0 0.0
        %812 = vmatprep.subr.mxu0 0.0
        %813 = vmatpush1.msra.mxu0 0.0
        %814 = vmatprep.subr.mxu0 0.0
        %815 = vmatpush1.msra.mxu0 0.0
        %816 = vmatprep.subr.mxu0 0.0
        %817 = vmatpush1.msra.mxu0 0.0
        %818 = vmatprep.subr.mxu0 0.0
        %819 = vmatpush1.msra.mxu0 0.0
        %820 = vmatprep.subr.mxu0 0.0
        %821 = vmatpush1.msra.mxu0 0.0
        %822 = vmatprep.subr.mxu0 0.0
        %823 = vmatpush1.msra.mxu0 0.0
        %824 = vmatprep.subr.mxu0 0.0
        %825 = vmatpush1.msra.mxu0 0.0
        %826 = vmatprep.subr.mxu0 0.0
        %827 = vmatpush1.msra.mxu0 0.0
        %828 = vmatprep.subr.mxu0 0.0
        %829 = vmatpush1.msra.mxu0 0.0
        %830 = vmatprep.subr.mxu0 0.0
        %831 = vmatpush1.msra.mxu0 0.0
        %832 = vmatprep.subr.mxu0 0.0
        %833 = vmatpush1.msra.mxu0 0.0
        %834 = vmatprep.subr.mxu0 0.0
        %835 = vmatpush1.msra.mxu0 0.0
        %836 = vmatprep.mubr.f32.mxu0 0.0
        %837 = vmatmul.mubr.f32.gmra.mrb[0].mxu0 %v770
        %v838 = vpop.f32.mrb[0].mxu0
        %v839 = vadd.f32 %v632, %v838
        %v840 = vpop.f32.mrb[0].mxu0
        %v841 = vadd.f32 %v634, %v840
        %842 = vdwg.mxu0
        %vm843 = vcmp.gt.f32.partialorder %v839, 0.0
        %vm844 = vcmp.gt.f32.partialorder %v841, 0.0
        %v845 = vmul.f32 %v839, 0.1
        %v846 = vmul.f32 %v841, 0.1
        %v847 = vsel %vm843, %v839, %v845
        %v848 = vsel %vm844, %v841, %v846
        %v849 = vsel %vm430, %v847, 0.0
        %v850 = vsel %vm431, %v848, 0.0
        %853 = vrot.lane.b32.xlu0 %v849, 5
        %v854 = vpop.permute.xlu0 %853
        %855 = vrot.lane.b32.xlu0 %v850, 5
        %v856 = vpop.permute.xlu0 %855
        %vm857 = vcmask 39936
        %v858 = vsel %vm857, %v854, %v856
        %v861 = vsel %vm857, 0.0, %v854
        %862 = vrot.lane.b32.xlu0 %v849, 123
        %v863 = vpop.permute.xlu0 %862
        %864 = vrot.lane.b32.xlu0 %v850, 123
        %v865 = vpop.permute.xlu0 %864
        %vm866 = vcmask 1006592
        %v867 = vsel %vm866, %v863, %v865
        %vm870 = vcmask 154624
        %v871 = vsel %vm870, %v865, 0.0
        %s872 = scalar_lea.vmem [#allocation8], 16
        %v873 = vld [vmem:[%s872] sm:$0xff]
        %v875 = vsel %vm456, %v873, 0
        %877 = vmatprep.subr.mxu0 %v858
        %878 = vmatpush1.msra.mxu0 %v861
        %879 = vmatprep.subr.mxu0 %v850
        %880 = vmatpush1.msra.mxu0 %v849
        %881 = vmatprep.subr.mxu0 %v871
        %882 = vmatpush1.msra.mxu0 %v867
        %883 = vmatprep.subr.mxu0 %v462
        %884 = vmatpush1.msra.mxu0 %v462
        %885 = vmatprep.subr.mxu0 0.0
        %886 = vmatpush1.msra.mxu0 0.0
        %887 = vmatprep.subr.mxu0 0.0
        %888 = vmatpush1.msra.mxu0 0.0
        %889 = vmatprep.subr.mxu0 0.0
        %890 = vmatpush1.msra.mxu0 0.0
        %891 = vmatprep.subr.mxu0 0.0
        %892 = vmatpush1.msra.mxu0 0.0
        %893 = vmatprep.subr.mxu0 0.0
        %894 = vmatpush1.msra.mxu0 0.0
        %895 = vmatprep.subr.mxu0 0.0
        %896 = vmatpush1.msra.mxu0 0.0
        %897 = vmatprep.subr.mxu0 0.0
        %898 = vmatpush1.msra.mxu0 0.0
        %899 = vmatprep.subr.mxu0 0.0
        %900 = vmatpush1.msra.mxu0 0.0
        %901 = vmatprep.subr.mxu0 0.0
        %902 = vmatpush1.msra.mxu0 0.0
        %903 = vmatprep.subr.mxu0 0.0
        %904 = vmatpush1.msra.mxu0 0.0
        %905 = vmatprep.subr.mxu0 0.0
        %906 = vmatpush1.msra.mxu0 0.0
        %907 = vmatprep.subr.mxu0 0.0
        %908 = vmatpush1.msra.mxu0 0.0
        %909 = vmatprep.subr.mxu0 0.0
        %910 = vmatpush1.msra.mxu0 0.0
        %911 = vmatprep.subr.mxu0 0.0
        %912 = vmatpush1.msra.mxu0 0.0
        %913 = vmatprep.subr.mxu0 0.0
        %914 = vmatpush1.msra.mxu0 0.0
        %915 = vmatprep.subr.mxu0 0.0
        %916 = vmatpush1.msra.mxu0 0.0
        %917 = vmatprep.subr.mxu0 0.0
        %918 = vmatpush1.msra.mxu0 0.0
        %919 = vmatprep.subr.mxu0 0.0
        %920 = vmatpush1.msra.mxu0 0.0
        %921 = vmatprep.subr.mxu0 0.0
        %922 = vmatpush1.msra.mxu0 0.0
        %923 = vmatprep.subr.mxu0 0.0
        %924 = vmatpush1.msra.mxu0 0.0
        %925 = vmatprep.subr.mxu0 0.0
        %926 = vmatpush1.msra.mxu0 0.0
        %927 = vmatprep.subr.mxu0 0.0
        %928 = vmatpush1.msra.mxu0 0.0
        %929 = vmatprep.subr.mxu0 0.0
        %930 = vmatpush1.msra.mxu0 0.0
        %931 = vmatprep.subr.mxu0 0.0
        %932 = vmatpush1.msra.mxu0 0.0
        %933 = vmatprep.subr.mxu0 0.0
        %934 = vmatpush1.msra.mxu0 0.0
        %935 = vmatprep.subr.mxu0 0.0
        %936 = vmatpush1.msra.mxu0 0.0
        %937 = vmatprep.subr.mxu0 0.0
        %938 = vmatpush1.msra.mxu0 0.0
        %939 = vmatprep.subr.mxu0 0.0
        %940 = vmatpush1.msra.mxu0 0.0
        %941 = vmatprep.mubr.f32.mxu0 0.0
        %942 = vmatmul.mubr.f32.gmra.mrb[0].mxu0 %v875
        %v943 = vpop.f32.mrb[0].mxu0
        %v944 = vadd.f32 0.0, %v943
        %v945 = vpop.f32.mrb[0].mxu0
        %v946 = vadd.f32 0.0, %v945
        %947 = vdwg.mxu0
        %vm948 = vcmp.gt.f32.partialorder %v944, 0.0
        %vm949 = vcmp.gt.f32.partialorder %v946, 0.0
        %v950 = vmul.f32 %v944, 0.1
        %v951 = vmul.f32 %v946, 0.1
        %v952 = vsel %vm948, %v944, %v950
        %v953 = vsel %vm949, %v946, %v951
        %v954 = vsel %vm430, %v952, 0.0
        %v955 = vsel %vm431, %v953, 0.0
        %958 = vrot.lane.b32.xlu0 %v954, 1
        %v959 = vpop.permute.xlu0 %958
        %960 = vrot.lane.b32.xlu0 %v955, 1
        %v961 = vpop.permute.xlu0 %960
        %v962 = vsel %vm440, %v959, %v961
        %v965 = vsel %vm440, 0.0, %v959
        %966 = vrot.lane.b32.xlu0 %v954, 127
        %v967 = vpop.permute.xlu0 %966
        %968 = vrot.lane.b32.xlu0 %v955, 127
        %v969 = vpop.permute.xlu0 %968
        %v970 = vsel %vm449, %v967, %v969
        %v973 = vsel %vm453, %v969, 0.0
        %s974 = scalar_lea.vmem [#allocation10], 16
        %v975 = vld [vmem:[%s974] sm:$0xff]
        %v977 = vsel %vm456, %v975, 0
        %979 = vmatprep.subr.mxu0 %v962
        %980 = vmatpush1.msra.mxu0 %v965
        %981 = vmatprep.subr.mxu0 %v955
        %982 = vmatpush1.msra.mxu0 %v954
        %983 = vmatprep.subr.mxu0 %v973
        %984 = vmatpush1.msra.mxu0 %v970
        %985 = vmatprep.subr.mxu0 %v462
        %986 = vmatpush1.msra.mxu0 %v462
        %987 = vmatprep.subr.mxu0 0.0
        %988 = vmatpush1.msra.mxu0 0.0
        %989 = vmatprep.subr.mxu0 0.0
        %990 = vmatpush1.msra.mxu0 0.0
        %991 = vmatprep.subr.mxu0 0.0
        %992 = vmatpush1.msra.mxu0 0.0
        %993 = vmatprep.subr.mxu0 0.0
        %994 = vmatpush1.msra.mxu0 0.0
        %995 = vmatprep.subr.mxu0 0.0
        %996 = vmatpush1.msra.mxu0 0.0
        %997 = vmatprep.subr.mxu0 0.0
        %998 = vmatpush1.msra.mxu0 0.0
        %999 = vmatprep.subr.mxu0 0.0
        %1000 = vmatpush1.msra.mxu0 0.0
        %1001 = vmatprep.subr.mxu0 0.0
        %1002 = vmatpush1.msra.mxu0 0.0
        %1003 = vmatprep.subr.mxu0 0.0
        %1004 = vmatpush1.msra.mxu0 0.0
        %1005 = vmatprep.subr.mxu0 0.0
        %1006 = vmatpush1.msra.mxu0 0.0
        %1007 = vmatprep.subr.mxu0 0.0
        %1008 = vmatpush1.msra.mxu0 0.0
        %1009 = vmatprep.subr.mxu0 0.0
        %1010 = vmatpush1.msra.mxu0 0.0
        %1011 = vmatprep.subr.mxu0 0.0
        %1012 = vmatpush1.msra.mxu0 0.0
        %1013 = vmatprep.subr.mxu0 0.0
        %1014 = vmatpush1.msra.mxu0 0.0
        %1015 = vmatprep.subr.mxu0 0.0
        %1016 = vmatpush1.msra.mxu0 0.0
        %1017 = vmatprep.subr.mxu0 0.0
        %1018 = vmatpush1.msra.mxu0 0.0
        %1019 = vmatprep.subr.mxu0 0.0
        %1020 = vmatpush1.msra.mxu0 0.0
        %1021 = vmatprep.subr.mxu0 0.0
        %1022 = vmatpush1.msra.mxu0 0.0
        %1023 = vmatprep.subr.mxu0 0.0
        %1024 = vmatpush1.msra.mxu0 0.0
        %1025 = vmatprep.subr.mxu0 0.0
        %1026 = vmatpush1.msra.mxu0 0.0
        %1027 = vmatprep.subr.mxu0 0.0
        %1028 = vmatpush1.msra.mxu0 0.0
        %1029 = vmatprep.subr.mxu0 0.0
        %1030 = vmatpush1.msra.mxu0 0.0
        %1031 = vmatprep.subr.mxu0 0.0
        %1032 = vmatpush1.msra.mxu0 0.0
        %1033 = vmatprep.subr.mxu0 0.0
        %1034 = vmatpush1.msra.mxu0 0.0
        %1035 = vmatprep.subr.mxu0 0.0
        %1036 = vmatpush1.msra.mxu0 0.0
        %1037 = vmatprep.subr.mxu0 0.0
        %1038 = vmatpush1.msra.mxu0 0.0
        %1039 = vmatprep.subr.mxu0 0.0
        %1040 = vmatpush1.msra.mxu0 0.0
        %1041 = vmatprep.subr.mxu0 0.0
        %1042 = vmatpush1.msra.mxu0 0.0
        %1043 = vmatprep.mubr.f32.mxu0 0.0
        %1044 = vmatmul.mubr.f32.gmra.mrb[0].mxu0 %v977
        %v1045 = vpop.f32.mrb[0].mxu0
        %v1046 = vadd.f32 %v839, %v1045
        %v1047 = vpop.f32.mrb[0].mxu0
        %v1048 = vadd.f32 %v841, %v1047
        %1049 = vdwg.mxu0
        %1052 = vrot.lane.b32.xlu0 %v1046, 116
        %v1053 = vpop.permute.xlu0 %1052
        %1054 = vrot.lane.b32.xlu0 %v1048, 116
        %v1055 = vpop.permute.xlu0 %1054
        %vm1056 = vcmask 949248
        %v1057 = vsel %vm1056, %v1053, %v1055
        %1059 = vst [vmem:[%s383] sm:$0xff] %v1057
        %s1060 = sand.u32 %s186, 1
        %s1061 = scalar_lea.sflag [#allocation4], %s1060
        %s1062 = sand.u32 %s186, 1
        %s1063 = smul.addr %s1062, 8
        %s1064 = scalar_lea.vmem [#allocation11], %s1063
        // Predicated region
        $region61: #{tpu_custom_call.1} parent=39 // pred_check
          %p1065 = pneg %p196
        $region62: #{tpu_custom_call.1} parent=39 // pred_check_branch
          %1067 = sbr.rel (%p1065) target = $region64
        $region63: #{tpu_custom_call.1} parent=39 // pred_region
          %s1069 = ssub.s32 128, 128
          %1070 = vsyncadd %s1061, %s1069
          %s1071 = smul.addr %s30, 3
          %s1072 = sadd.s32 %s31, %s1071
          %s1073 = smul.addr %s1072, 128
          %s1074 = scalar_lea.hbm %s5, %s1073
          %s1076 = sshll.u32 %s1064, 4
          %s1077 = int_to_ptr.vmem [resolvable:$true] %s1076
          %1079 = dma.vmem_to_hbm [thread:$0]  %s1077, 128, %s1074, %s1061
        $region64: #{tpu_custom_call.1} parent=39 // pred_fallthru
          _
      $region40: #{tpu_custom_call.1} parent=5 // pred_fallthru
        _
      %p1080 = scmp.le.s32.totalorder 2, %s21
      // Predicated region
      $region65: #{tpu_custom_call.1} parent=5 // pred_check
        %p1081 = pneg %p1080
      $region66: #{tpu_custom_call.1} parent=5 // pred_check_branch
        %1083 = sbr.rel (%p1081) target = $region68
      $region67: #{tpu_custom_call.1} parent=5 // pred_region
        %s1084 = ssub.s32 %s21, 2
        // Predicated region
        $region69: #{tpu_custom_call.1} parent=67 // pred_check
          %p1085 = pneg %p202
        $region70: #{tpu_custom_call.1} parent=67 // pred_check_branch
          %1087 = sbr.rel (%p1085) target = $region72
        $region71: #{tpu_custom_call.1} parent=67 // pred_region
          %s1088 = sand.u32 %s187, 1
          %s1089 = scalar_lea.sflag [#allocation4], %s1088
          %s1090 = sand.u32 %s187, 1
          %s1091 = smul.addr %s1090, 8
          %s1092 = scalar_lea.vmem [#allocation11], %s1091
          %1093 = dma.done %s1089, 128
        $region72: #{tpu_custom_call.1} parent=67 // pred_fallthru
          _
      $region68: #{tpu_custom_call.1} parent=5 // pred_fallthru
        _
    $region6: #{tpu_custom_call.1} parent=1 // loop_footer
      %s25 = sadd.s32 1, %s21
    $region7: #{tpu_custom_call.1} parent=1 // loop_footer_branch
      %20 = sbr.rel target = $region3
    $region8: #{tpu_custom_call.1} parent=1 // loop_exit
      _
    %1094 = vsyncpa [#allocation3], 1
    %s1095 = scalar_lea.sflag [#allocation3], 1
    %1096 = vsyncpa %s1095, 1
    %1097 = vsyncpa [#allocation6], 1
    %s1098 = scalar_lea.sflag [#allocation6], 1
    %1099 = vsyncpa %s1098, 1
    %1100 = vsyncpa [#allocation9], 1
    %1101 = vsyncpa [#allocation4], 1
    %s1102 = scalar_lea.sflag [#allocation4], 1
    %1103 = vsyncpa %s1102, 1

</llo_original>
